<compile_context>
chip_gen: v7x
topology: tpu7x:2x2x1
jax: 0.10.0
libtpu: 0.0.40
codegen_flags: <defaults>
</compile_context>

<pallas_src>
import functools

import jax
import jax.numpy as jnp
from jax.experimental import pallas as pl
from jax.experimental.pallas import tpu as pltpu


_MAX_BATCH_TILE = 1024  # rows per grid step for large batches (8-aligned)


def _ff_kernel(obs_head_ref, obs_ref, acs_ref,
               w1o_ref, tab_ref, w2_ref, b2_ref, w3_ref, b3_ref,
               out_ref):
    """Fused 3-layer MLP + conditional zeroing of the last 3 output columns.

    obs_head_ref : VMEM (hm, obs_dim) f32   block pinned at global row 0 (gate)
    obs_ref      : VMEM (tm, obs_dim) f32   batch tile
    acs_ref      : VMEM (tm, 1) int32       action indices
    w1o_ref      : VMEM (obs_dim, h1) bf16  W1 rows for the obs part
    tab_ref      : VMEM (A, h1) bf16        W1 rows for one-hot(acs), b1 folded
    w2_ref       : VMEM (h1, h2) bf16
    b2_ref       : VMEM (1, h2) f32
    w3_ref       : VMEM (h2, out_dim) bf16
    b3_ref       : VMEM (1, out_dim) f32
    out_ref      : VMEM (tm, out_dim) f32
    """
    obs = obs_ref[...]                                    # (tm, obs_dim) f32
    acs = acs_ref[...]                                    # (tm, 1) int32
    a_dim = tab_ref.shape[0]

    # Layer 1 (concat decomposed): obs @ W1_obs + one_hot(acs) @ (W1_act + b1).
    # bf16 MXU inputs, f32 accumulation.
    onehot = (jax.lax.broadcasted_iota(jnp.int32, (obs.shape[0], a_dim), 1)
              == acs).astype(jnp.bfloat16)                # (tm, A)
    h = jnp.dot(obs.astype(jnp.bfloat16), w1o_ref[...],
                preferred_element_type=jnp.float32)
    h = h + jnp.dot(onehot, tab_ref[...],
                    preferred_element_type=jnp.float32)
    h = jnp.maximum(h, 0.0)                               # f32 elementwise

    h = jnp.dot(h.astype(jnp.bfloat16), w2_ref[...],
                preferred_element_type=jnp.float32) + b2_ref[...]
    h = jnp.maximum(h, 0.0)

    y = jnp.dot(h.astype(jnp.bfloat16), w3_ref[...],
                preferred_element_type=jnp.float32) + b3_ref[...]

    # Gate: keep delta[:, -1, :] iff obs[0, -1] is an integer
    # (floor(x) == x  <=>  round(x) == x for all finite x).
    obs_dim = obs_ref.shape[1]
    last = obs_head_ref[0:1, obs_dim - 1:obs_dim]                  # (1, 1)
    keep = (jnp.floor(last) == last).astype(jnp.float32)           # (1, 1)

    # delta.view(bs, obs_dim, 3)[:, -1, :] == last 3 flat columns (row-major):
    # scale just those columns via one (1, out_dim) row, one full-width store.
    out_dim = out_ref.shape[1]
    col = jax.lax.broadcasted_iota(jnp.int32, (1, out_dim), 1)
    scale = jnp.where(col >= out_dim - 3, keep, jnp.float32(1.0))  # (1, out_dim)
    out_ref[...] = y * scale


def prepare_params(params, obs_dim):
    """One-time param prep: split W1, fold b1 into a per-action bias table,
    store matmul weights in bf16 (biases that are added elementwise stay f32)."""
    w1, b1 = params["w1"], params["b1"]
    return {
        "w1_obs": w1[:obs_dim].astype(jnp.bfloat16),            # (obs_dim, h1)
        "act_table": (w1[obs_dim:] + b1).astype(jnp.bfloat16),   # (A, h1)
        "w2": params["w2"].astype(jnp.bfloat16),
        "b2": params["b2"].astype(jnp.float32),
        "w3": params["w3"].astype(jnp.bfloat16),
        "b3": params["b3"].astype(jnp.float32),
    }


def ff_model_forward(kparams, obs, acs, data_statistics=None):
    """JAX/Pallas equivalent of FFModel.forward.

    obs : (bs, obs_dim) float32
    acs : (bs, 1) int action indices
    returns delta : (bs, obs_dim, 3) float32
    """
    del data_statistics  # unused, as in the reference module
    obs = obs.astype(jnp.float32)
    bs, obs_dim = obs.shape
    acs = acs.reshape(bs, 1).astype(jnp.int32)

    w1o = kparams["w1_obs"]
    tab = kparams["act_table"]
    w2, b2, w3, b3 = (kparams[k] for k in ("w2", "b2", "w3", "b3"))
    a_dim, h1 = tab.shape
    h2 = w2.shape[1]
    out_dim = w3.shape[1]

    # Batch tiling: single block for bs <= 8 (block dims must be 8-aligned or
    # full); otherwise split into >= 2 tiles so the "parallel" grid axis shards
    # across both TensorCores on v7x, capped at _MAX_BATCH_TILE rows per step.
    if bs <= 8:
        tm = bs
    else:
        tm = min(_MAX_BATCH_TILE, ((pl.cdiv(bs, 2) + 7) // 8) * 8)
    num_blocks = pl.cdiv(bs, tm)
    hm = min(bs, 8)  # rows of the obs block pinned at global row 0 (gate input)

    flops = 2 * bs * (obs_dim * h1 + a_dim * h1 + h1 * h2 + h2 * out_dim)
    bytes_accessed = (4 * bs * obs_dim + 4 * bs                       # obs+acs
                      + 2 * (obs_dim * h1 + a_dim * h1 + h1 * h2 + h2 * out_dim)
                      + 4 * (h2 + out_dim)                            # biases
                      + 4 * bs * out_dim)                             # output

    grid_spec = pltpu.PrefetchScalarGridSpec(
        num_scalar_prefetch=0,
        grid=(num_blocks,),
        in_specs=[
            pl.BlockSpec((hm, obs_dim), lambda i: (0, 0)),   # obs head (row 0)
            pl.BlockSpec((tm, obs_dim), lambda i: (i, 0)),   # obs tile
            pl.BlockSpec((tm, 1), lambda i: (i, 0)),         # acs tile
            pl.BlockSpec((obs_dim, h1), lambda i: (0, 0)),   # w1_obs (resident)
            pl.BlockSpec((a_dim, h1), lambda i: (0, 0)),     # action table
            pl.BlockSpec((h1, h2), lambda i: (0, 0)),        # w2
            pl.BlockSpec((1, h2), lambda i: (0, 0)),         # b2
            pl.BlockSpec((h2, out_dim), lambda i: (0, 0)),   # w3
            pl.BlockSpec((1, out_dim), lambda i: (0, 0)),    # b3
        ],
        out_specs=pl.BlockSpec((tm, out_dim), lambda i: (i, 0)),
    )

    flat = pl.pallas_call(
        _ff_kernel,
        out_shape=jax.ShapeDtypeStruct((bs, out_dim), jnp.float32),
        grid_spec=grid_spec,
        compiler_params=pltpu.CompilerParams(
            dimension_semantics=("parallel",)),
        cost_estimate=pl.CostEstimate(
            flops=flops, transcendentals=0, bytes_accessed=bytes_accessed),
    )(obs, obs, acs, w1o, tab, w2, b2, w3, b3)

    # Lane-dense flat output from the kernel; view as (bs, obs_dim, 3) here.
    return flat.reshape(bs, obs_dim, 3)


def init_params(key, obs_dim, action_dim, net_arch=(64, 64)):
    """Deterministic synthetic f32 parameters matching FFModel.__init__ shapes."""
    in_dim = obs_dim + action_dim
    out_dim = obs_dim * 3
    dims = [in_dim, net_arch[0], net_arch[1], out_dim]
    keys = jax.random.split(key, 3)
    params = {}
    for i, (d_in, d_out) in enumerate(zip(dims[:-1], dims[1:]), start=1):
        bound = 1.0 / float(d_in) ** 0.5
        params[f"w{i}"] = jax.random.uniform(
            keys[i - 1], (d_in, d_out), jnp.float32, -bound, bound)
        params[f"b{i}"] = jnp.zeros((1, d_out), jnp.float32)
    return params


def _reference_forward(params, obs, acs, matmul_dtype=jnp.float32):
    """Pure-JAX reference mirroring the PyTorch code.  `matmul_dtype=bf16`
    reproduces the kernel's precision (bf16 matmul inputs, f32 accumulate)."""
    bs, obs_dim = obs.shape
    w1, b1 = params["w1"], params["b1"]
    action_dim = w1.shape[0] - obs_dim
    acs_oh = jnp.squeeze(
        jax.nn.one_hot(acs.reshape(bs, 1), action_dim, dtype=jnp.float32), 1)
    x = jnp.concatenate([obs, acs_oh], axis=1)

    def dot(a, b):
        return jnp.dot(a.astype(matmul_dtype), b.astype(matmul_dtype),
                       preferred_element_type=jnp.float32)

    h = jnp.maximum(dot(x, w1) + b1, 0.0)
    h = jnp.maximum(dot(h, params["w2"]) + params["b2"], 0.0)
    y = dot(h, params["w3"]) + params["b3"]
    delta = y.reshape(bs, obs_dim, 3)
    last = obs[0, -1]
    keep = jnp.where(jnp.round(last) == last, 1.0, 0.0)
    delta = delta.at[:, -1, :].multiply(keep)
    return delta


if __name__ == "__main__":
    key = jax.random.PRNGKey(0)
    (k_obs, k_acs, k_par, k_obs2, k_acs2, k_obs3, k_acs3) = jax.random.split(key, 7)

    bs, obs_dim, action_dim = 8, 16, 4
    obs = jax.random.normal(k_obs, (bs, obs_dim), jnp.float32)
    acs = jax.random.randint(k_acs, (bs, 1), 0, action_dim, jnp.int32)
    params = init_params(k_par, obs_dim, action_dim)
    kparams = prepare_params(params, obs_dim)

    fwd = jax.jit(functools.partial(ff_model_forward, kparams))

    # Case 1: obs[0, -1] is non-integer -> last delta row zeroed.
    delta = fwd(obs, acs)
    jax.block_until_ready(delta)
    assert delta.shape == (bs, obs_dim, 3)
    ref_bf16 = _reference_forward(params, obs, acs, matmul_dtype=jnp.bfloat16)
    ref_f32 = _reference_forward(params, obs, acs, matmul_dtype=jnp.float32)
    assert jnp.allclose(delta, ref_bf16, atol=1e-4, rtol=1e-4)
    assert jnp.allclose(delta, ref_f32, atol=5e-2, rtol=5e-2)

    # Case 2: integer "timestamp" in obs[0, -1] -> last delta row kept.
    obs_int = obs.at[0, -1].set(3.0)
    delta_i = fwd(obs_int, acs)
    jax.block_until_ready(delta_i)
    ref_i = _reference_forward(params, obs_int, acs, matmul_dtype=jnp.bfloat16)
    assert jnp.allclose(delta_i, ref_i, atol=1e-4, rtol=1e-4)

    # Case 3: mid-size batch -> 2-step "parallel" grid with a partial last tile.
    bs_m = 100
    obs_m = jax.random.normal(k_obs3, (bs_m, obs_dim), jnp.float32)
    acs_m = jax.random.randint(k_acs3, (bs_m, 1), 0, action_dim, jnp.int32)
    delta_m = jax.jit(functools.partial(ff_model_forward, kparams))(obs_m, acs_m)
    jax.block_until_ready(delta_m)
    ref_m = _reference_forward(params, obs_m, acs_m, matmul_dtype=jnp.bfloat16)
    assert jnp.allclose(delta_m, ref_m, atol=1e-4, rtol=1e-4)

    # Case 4: large batch exercising the 1024-row tile cap + partial tile.
    bs_l = 2560
    obs_l = jax.random.normal(k_obs2, (bs_l, obs_dim), jnp.float32)
    obs_l = obs_l.at[0, -1].set(7.0)
    acs_l = jax.random.randint(k_acs2, (bs_l, 1), 0, action_dim, jnp.int32)
    delta_l = jax.jit(functools.partial(ff_model_forward, kparams))(obs_l, acs_l)
    jax.block_until_ready(delta_l)
    ref_l = _reference_forward(params, obs_l, acs_l, matmul_dtype=jnp.bfloat16)
    assert jnp.allclose(delta_l, ref_l, atol=1e-4, rtol=1e-4)

    print("KERNEL_OK")
</pallas_src>

<mosaic_0001>
module attributes {stable_mosaic.version = 11 : i64} {
  func.func @_ff_kernel(%arg0: i32, %arg1: memref<8x16xf32, #tpu.memory_space<vmem>>, %arg2: memref<8x16xf32, #tpu.memory_space<vmem>>, %arg3: memref<8x1xi32, #tpu.memory_space<vmem>>, %arg4: memref<16x64xbf16, #tpu.memory_space<vmem>>, %arg5: memref<4x64xbf16, #tpu.memory_space<vmem>>, %arg6: memref<64x64xbf16, #tpu.memory_space<vmem>>, %arg7: memref<1x64xf32, #tpu.memory_space<vmem>>, %arg8: memref<64x48xbf16, #tpu.memory_space<vmem>>, %arg9: memref<1x48xf32, #tpu.memory_space<vmem>>, %arg10: memref<8x48xf32, #tpu.memory_space<vmem>>) attributes {dimension_semantics = [#tpu.dimension_semantics<parallel>], iteration_bounds = array<i64: 1>, scalar_prefetch = 0 : i64, scratch_operands = 0 : i64, tpu.core_type = #tpu.core_type<tc>, window_params = [{pipeline_mode = #tpu.pipeline_mode<synchronous>, transform_indices = @transform_0, window_bounds = array<i64: 8, 16>}, {transform_indices = @transform_1, window_bounds = array<i64: 8, 16>}, {transform_indices = @transform_2, window_bounds = array<i64: 8, 1>}, {pipeline_mode = #tpu.pipeline_mode<synchronous>, transform_indices = @transform_3, window_bounds = array<i64: 16, 64>}, {pipeline_mode = #tpu.pipeline_mode<synchronous>, transform_indices = @transform_4, window_bounds = array<i64: 4, 64>}, {pipeline_mode = #tpu.pipeline_mode<synchronous>, transform_indices = @transform_5, window_bounds = array<i64: 64, 64>}, {pipeline_mode = #tpu.pipeline_mode<synchronous>, transform_indices = @transform_6, window_bounds = array<i64: 1, 64>}, {pipeline_mode = #tpu.pipeline_mode<synchronous>, transform_indices = @transform_7, window_bounds = array<i64: 64, 48>}, {pipeline_mode = #tpu.pipeline_mode<synchronous>, transform_indices = @transform_8, window_bounds = array<i64: 1, 48>}, {transform_indices = @transform_9, window_bounds = array<i64: 8, 48>}]} {
    %c0 = arith.constant 0 : index
    %c0_0 = arith.constant 0 : index
    %0 = vector.load %arg2[%c0, %c0_0] : memref<8x16xf32, #tpu.memory_space<vmem>>, vector<8x16xf32>
    %c0_1 = arith.constant 0 : index
    %c0_2 = arith.constant 0 : index
    %1 = vector.load %arg3[%c0_1, %c0_2] : memref<8x1xi32, #tpu.memory_space<vmem>>, vector<8x1xi32>
    %2 = tpu.iota {dimensions = array<i32: 1>} : vector<8x4xi32>
    %3 = vector.broadcast %1 : vector<8x1xi32> to vector<8x4xi32>
    %4 = arith.cmpi eq, %2, %3 : vector<8x4xi32>
    %5 = arith.extui %4 : vector<8x4xi1> to vector<8x4xi32>
    %6 = arith.sitofp %5 : vector<8x4xi32> to vector<8x4xf32>
    %7 = arith.truncf %6 : vector<8x4xf32> to vector<8x4xbf16>
    %8 = arith.truncf %0 : vector<8x16xf32> to vector<8x16xbf16>
    %c0_3 = arith.constant 0 : index
    %c0_4 = arith.constant 0 : index
    %9 = vector.load %arg4[%c0_3, %c0_4] : memref<16x64xbf16, #tpu.memory_space<vmem>>, vector<16x64xbf16>
    %cst = arith.constant dense<0.000000e+00> : vector<8x64xf32>
    %10 = tpu.matmul %8, %9, %cst {dimension_numbers = #tpu.dot_dimension_numbers<[1], [0], [0], [1], [0, 0, 1, 1], [], []>} : vector<8x16xbf16>, vector<16x64xbf16>, vector<8x64xf32> -> vector<8x64xf32>
    %c0_5 = arith.constant 0 : index
    %c0_6 = arith.constant 0 : index
    %11 = vector.load %arg5[%c0_5, %c0_6] : memref<4x64xbf16, #tpu.memory_space<vmem>>, vector<4x64xbf16>
    %cst_7 = arith.constant dense<0.000000e+00> : vector<8x64xf32>
    %12 = tpu.matmul %7, %11, %cst_7 {dimension_numbers = #tpu.dot_dimension_numbers<[1], [0], [0], [1], [0, 0, 1, 1], [], []>} : vector<8x4xbf16>, vector<4x64xbf16>, vector<8x64xf32> -> vector<8x64xf32>
    %13 = arith.addf %10, %12 : vector<8x64xf32>
    %cst_8 = arith.constant 0.000000e+00 : f32
    %14 = vector.broadcast %cst_8 : f32 to vector<8x64xf32>
    %15 = arith.maximumf %13, %14 : vector<8x64xf32>
    %16 = arith.truncf %15 : vector<8x64xf32> to vector<8x64xbf16>
    %c0_9 = arith.constant 0 : index
    %c0_10 = arith.constant 0 : index
    %17 = vector.load %arg6[%c0_9, %c0_10] : memref<64x64xbf16, #tpu.memory_space<vmem>>, vector<64x64xbf16>
    %cst_11 = arith.constant dense<0.000000e+00> : vector<8x64xf32>
    %18 = tpu.matmul %16, %17, %cst_11 {dimension_numbers = #tpu.dot_dimension_numbers<[1], [0], [0], [1], [0, 0, 1, 1], [], []>} : vector<8x64xbf16>, vector<64x64xbf16>, vector<8x64xf32> -> vector<8x64xf32>
    %c0_12 = arith.constant 0 : index
    %c0_13 = arith.constant 0 : index
    %19 = vector.load %arg7[%c0_12, %c0_13] : memref<1x64xf32, #tpu.memory_space<vmem>>, vector<1x64xf32>
    %20 = vector.broadcast %19 : vector<1x64xf32> to vector<8x64xf32>
    %21 = arith.addf %18, %20 : vector<8x64xf32>
    %cst_14 = arith.constant 0.000000e+00 : f32
    %22 = vector.broadcast %cst_14 : f32 to vector<8x64xf32>
    %23 = arith.maximumf %21, %22 : vector<8x64xf32>
    %24 = arith.truncf %23 : vector<8x64xf32> to vector<8x64xbf16>
    %c0_15 = arith.constant 0 : index
    %c0_16 = arith.constant 0 : index
    %25 = vector.load %arg8[%c0_15, %c0_16] : memref<64x48xbf16, #tpu.memory_space<vmem>>, vector<64x48xbf16>
    %cst_17 = arith.constant dense<0.000000e+00> : vector<8x48xf32>
    %26 = tpu.matmul %24, %25, %cst_17 {dimension_numbers = #tpu.dot_dimension_numbers<[1], [0], [0], [1], [0, 0, 1, 1], [], []>} : vector<8x64xbf16>, vector<64x48xbf16>, vector<8x48xf32> -> vector<8x48xf32>
    %c0_18 = arith.constant 0 : index
    %c0_19 = arith.constant 0 : index
    %27 = vector.load %arg9[%c0_18, %c0_19] : memref<1x48xf32, #tpu.memory_space<vmem>>, vector<1x48xf32>
    %28 = vector.broadcast %27 : vector<1x48xf32> to vector<8x48xf32>
    %29 = arith.addf %26, %28 : vector<8x48xf32>
    %c0_20 = arith.constant 0 : index
    %c15 = arith.constant 15 : index
    %30 = vector.load %arg1[%c0_20, %c15] : memref<8x16xf32, #tpu.memory_space<vmem>>, vector<1x1xf32>
    %31 = math.floor %30 : vector<1x1xf32>
    %32 = arith.cmpf oeq, %31, %30 : vector<1x1xf32>
    %33 = arith.extui %32 : vector<1x1xi1> to vector<1x1xi32>
    %34 = arith.sitofp %33 : vector<1x1xi32> to vector<1x1xf32>
    %35 = tpu.iota {dimensions = array<i32: 1>} : vector<1x48xi32>
    %c45_i32 = arith.constant 45 : i32
    %36 = vector.broadcast %c45_i32 : i32 to vector<1x48xi32>
    %37 = arith.cmpi sge, %35, %36 : vector<1x48xi32>
    %cst_21 = arith.constant 1.000000e+00 : f32
    %38 = vector.shape_cast %34 : vector<1x1xf32> to vector<1x1xf32>
    %39 = vector.broadcast %38 : vector<1x1xf32> to vector<1x48xf32>
    %40 = vector.broadcast %cst_21 : f32 to vector<1x48xf32>
    %41 = arith.select %37, %39, %40 : vector<1x48xi1>, vector<1x48xf32>
    %42 = vector.broadcast %41 : vector<1x48xf32> to vector<8x48xf32>
    %43 = arith.mulf %29, %42 : vector<8x48xf32>
    %c0_22 = arith.constant 0 : index
    %c0_23 = arith.constant 0 : index
    %44 = vector.load %arg10[%c0_22, %c0_23] : memref<8x48xf32, #tpu.memory_space<vmem>>, vector<8x48xf32>
    tpu.vector_store %arg10[%c0_22, %c0_23], %43 {strides = array<i32>} : memref<8x48xf32, #tpu.memory_space<vmem>>, vector<8x48xf32>,
    return
  }
  func.func @transform_0(%arg0: i32) -> (i32, i32) {
    %c0_i32 = arith.constant 0 : i32
    %c0_i32_0 = arith.constant 0 : i32
    %c0_i32_1 = arith.constant 0 : i32
    return %c0_i32, %c0_i32_0 : i32, i32
  }
  func.func @transform_1(%arg0: i32) -> (i32, i32) {
    %c0_i32 = arith.constant 0 : i32
    %c0_i32_0 = arith.constant 0 : i32
    return %arg0, %c0_i32 : i32, i32
  }
  func.func @transform_2(%arg0: i32) -> (i32, i32) {
    %c0_i32 = arith.constant 0 : i32
    %c0_i32_0 = arith.constant 0 : i32
    return %arg0, %c0_i32 : i32, i32
  }
  func.func @transform_3(%arg0: i32) -> (i32, i32) {
    %c0_i32 = arith.constant 0 : i32
    %c0_i32_0 = arith.constant 0 : i32
    %c0_i32_1 = arith.constant 0 : i32
    return %c0_i32, %c0_i32_0 : i32, i32
  }
  func.func @transform_4(%arg0: i32) -> (i32, i32) {
    %c0_i32 = arith.constant 0 : i32
    %c0_i32_0 = arith.constant 0 : i32
    %c0_i32_1 = arith.constant 0 : i32
    return %c0_i32, %c0_i32_0 : i32, i32
  }
  func.func @transform_5(%arg0: i32) -> (i32, i32) {
    %c0_i32 = arith.constant 0 : i32
    %c0_i32_0 = arith.constant 0 : i32
    %c0_i32_1 = arith.constant 0 : i32
    return %c0_i32, %c0_i32_0 : i32, i32
  }
  func.func @transform_6(%arg0: i32) -> (i32, i32) {
    %c0_i32 = arith.constant 0 : i32
    %c0_i32_0 = arith.constant 0 : i32
    %c0_i32_1 = arith.constant 0 : i32
    return %c0_i32, %c0_i32_0 : i32, i32
  }
  func.func @transform_7(%arg0: i32) -> (i32, i32) {
    %c0_i32 = arith.constant 0 : i32
    %c0_i32_0 = arith.constant 0 : i32
    %c0_i32_1 = arith.constant 0 : i32
    return %c0_i32, %c0_i32_0 : i32, i32
  }
  func.func @transform_8(%arg0: i32) -> (i32, i32) {
    %c0_i32 = arith.constant 0 : i32
    %c0_i32_0 = arith.constant 0 : i32
    %c0_i32_1 = arith.constant 0 : i32
    return %c0_i32, %c0_i32_0 : i32, i32
  }
  func.func @transform_9(%arg0: i32) -> (i32, i32) {
    %c0_i32 = arith.constant 0 : i32
    %c0_i32_0 = arith.constant 0 : i32
    return %arg0, %c0_i32 : i32, i32
  }
}

</mosaic_0001>

<llo_original>
// kernel: ff_model_forward.1
$region0: #{ff_model_forward.1}
  #allocation0 [shape = 'u32[]', space=smem, size = 0x4, offset = 0x4, fixed_abs, tag = 'smem constant byte address 0x4 - core index']
  #allocation1 [shape = 'u32[144,128]{1,0:T(1,128)}', space=vmem, size = 0x12000, scoped, tag = 'internal scratch']
  %s0 = inlined_call_operand.vmem [shape: f32[8,16], index: 0, kind: input, shape index: {}, may-alias: {0,1}]
  %s1 = inlined_call_operand.vmem [shape: f32[8,16], index: 1, kind: input, shape index: {}, may-alias: {0,1}]
  %s2 = inlined_call_operand.vmem [shape: s32[8,1], index: 2, kind: input, shape index: {}]
  %s3 = inlined_call_operand.vmem [shape: bf16[16,64], index: 3, kind: input, shape index: {}]
  %s4 = inlined_call_operand.vmem [shape: bf16[4,64], index: 4, kind: input, shape index: {}]
  %s5 = inlined_call_operand.hbm [shape: bf16[64,64], index: 5, kind: input, shape index: {}]
  %s6 = inlined_call_operand.vmem [shape: f32[1,64], index: 6, kind: input, shape index: {}]
  %s7 = inlined_call_operand.vmem [shape: bf16[64,48], index: 7, kind: input, shape index: {}]
  %s8 = inlined_call_operand.vmem [shape: f32[1,48], index: 8, kind: input, shape index: {}]
  %s9 = inlined_call_operand.vmem [shape: f32[8,48], index: 9, kind: output, shape index: {}]
  %s10 = sld [smem:[#allocation0]]
  $region50: #{ff_model_forward.1} parent=0
    _
  %s12 = ssub.s32 1, %s10
  %s13 = scalar_select 0, %s12, %s10
  $region1: #{ff_model_forward.1} parent=0
    #allocation2 [shape = 'u8[16384]{0}', space=vmem, size = 0x4000, scoped, tag = 'input window, operand 5, single buffered']
    #allocation3 [shape = 's32[1]{0}', space=sflag, size = 0x4, scoped, tag = 'scoped memory for ff_model_forward.1']
    %14 = vsyncpa [#allocation3], 0
    // Predicated region
    $region2: #{ff_model_forward.1} parent=1 // pred_check
      _
    $region3: #{ff_model_forward.1} parent=1 // pred_check_branch
      %16 = sbr.rel (0) target = $region5
    $region4: #{ff_model_forward.1} parent=1 // pred_region
      _
    $region5: #{ff_model_forward.1} parent=1 // pred_fallthru
      _
    // Predicated region
    $region6: #{ff_model_forward.1} parent=1 // pred_check
      _
    $region7: #{ff_model_forward.1} parent=1 // pred_check_branch
      %18 = sbr.rel (0) target = $region9
    $region8: #{ff_model_forward.1} parent=1 // pred_region
      _
    $region9: #{ff_model_forward.1} parent=1 // pred_fallthru
      _
    // Predicated region
    $region10: #{ff_model_forward.1} parent=1 // pred_check
      _
    $region11: #{ff_model_forward.1} parent=1 // pred_check_branch
      %20 = sbr.rel (0) target = $region13
    $region12: #{ff_model_forward.1} parent=1 // pred_region
      _
    $region13: #{ff_model_forward.1} parent=1 // pred_fallthru
      _
    // Predicated region
    $region14: #{ff_model_forward.1} parent=1 // pred_check
      _
    $region15: #{ff_model_forward.1} parent=1 // pred_check_branch
      %22 = sbr.rel (0) target = $region17
    $region16: #{ff_model_forward.1} parent=1 // pred_region
      _
    $region17: #{ff_model_forward.1} parent=1 // pred_fallthru
      _
    // Predicated region
    $region18: #{ff_model_forward.1} parent=1 // pred_check
      _
    $region19: #{ff_model_forward.1} parent=1 // pred_check_branch
      %24 = sbr.rel (0) target = $region21
    $region20: #{ff_model_forward.1} parent=1 // pred_region
      _
    $region21: #{ff_model_forward.1} parent=1 // pred_fallthru
      _
    // Predicated region
    $region22: #{ff_model_forward.1} parent=1 // pred_check
      _
    $region23: #{ff_model_forward.1} parent=1 // pred_check_branch
      %26 = sbr.rel (0) target = $region25
    $region24: #{ff_model_forward.1} parent=1 // pred_region
      %s28 = ssub.s32 512, 512
      %29 = vsyncadd [#allocation3], %s28
      %s30 = sshll.u32 [#allocation2], 4
      %s31 = int_to_ptr.vmem [resolvable:$true] %s30
      %36 = dma.hbm_to_vmem [thread:$0]  %s5, 512, %s31, [#allocation3], 64, 64, 4
    $region25: #{ff_model_forward.1} parent=1 // pred_fallthru
      _
    // Predicated region
    $region26: #{ff_model_forward.1} parent=1 // pred_check
      _
    $region27: #{ff_model_forward.1} parent=1 // pred_check_branch
      %38 = sbr.rel (0) target = $region29
    $region28: #{ff_model_forward.1} parent=1 // pred_region
      _
    $region29: #{ff_model_forward.1} parent=1 // pred_fallthru
      _
    // Predicated region
    $region30: #{ff_model_forward.1} parent=1 // pred_check
      _
    $region31: #{ff_model_forward.1} parent=1 // pred_check_branch
      %40 = sbr.rel (0) target = $region33
    $region32: #{ff_model_forward.1} parent=1 // pred_region
      _
    $region33: #{ff_model_forward.1} parent=1 // pred_fallthru
      _
    // Predicated region
    $region34: #{ff_model_forward.1} parent=1 // pred_check
      _
    $region35: #{ff_model_forward.1} parent=1 // pred_check_branch
      %42 = sbr.rel (0) target = $region37
    $region36: #{ff_model_forward.1} parent=1 // pred_region
      _
    $region37: #{ff_model_forward.1} parent=1 // pred_fallthru
      _
    // Predicated region
    $region38: #{ff_model_forward.1} parent=1 // pred_check
      _
    $region39: #{ff_model_forward.1} parent=1 // pred_check_branch
      %44 = sbr.rel (0) target = $region41
    $region40: #{ff_model_forward.1} parent=1 // pred_region
      %45 = dma.done [#allocation3], 512
    $region41: #{ff_model_forward.1} parent=1 // pred_fallthru
      _
    %v47 = vld [vmem:[%s1] sm:$0xff]
    %v48 = vld [vmem:[%s2] sm:$0xff]
    %v49 = vlaneseq
    %v50 = vand.u32 %v49, 127
    %51 = vset.pattern.permute.xlu0 0
    %52 = vperm.xlu0 %51, %v48
    %v53 = vpop.permute.xlu0 %52
    %vm54 = vcmp.eq.s32.totalorder %v50, %v53
    %v55 = vsel %vm54, 1, 0
    %v56 = vcvt.s32.f32 %v55
    %v57 = vpack.c.bf16 %v56, %v56
    %v58 = vpack.c.bf16 %v47, %v47
    %v59 = vld [vmem:[%s3] sm:$0xf]
    %v60 = vld [vmem:[%s3 + $0x4] sm:$0xf]
    %v61 = vld [vmem:[%s4] sm:$0x3]
    %vm62 = vcmask 31744
    %v64 = vsel %vm62, %v57, 0
    %vm66 = vcmask 1041408
    %v68 = vsel %vm66, %v61, 0
    %70 = vmatprep.subr.bf16.mxu0 0
    %71 = vmatpush1.bf16.msra.mxu0 %v68
    %72 = vmatprep.subr.bf16.mxu0 0
    %73 = vmatpush1.bf16.msra.mxu0 0
    %74 = vmatprep.subr.bf16.mxu0 0
    %75 = vmatpush1.bf16.msra.mxu0 0
    %76 = vmatprep.subr.bf16.mxu0 0
    %77 = vmatpush1.bf16.msra.mxu0 0
    %78 = vmatprep.subr.bf16.mxu0 0
    %79 = vmatpush1.bf16.msra.mxu0 0
    %80 = vmatprep.subr.bf16.mxu0 0
    %81 = vmatpush1.bf16.msra.mxu0 0
    %82 = vmatprep.subr.bf16.mxu0 0
    %83 = vmatpush1.bf16.msra.mxu0 0
    %84 = vmatprep.subr.bf16.mxu0 0
    %85 = vmatpush1.bf16.msra.mxu0 0
    %86 = vmatprep.subr.bf16.mxu0 0
    %87 = vmatpush1.bf16.msra.mxu0 0
    %88 = vmatprep.subr.bf16.mxu0 0
    %89 = vmatpush1.bf16.msra.mxu0 0
    %90 = vmatprep.subr.bf16.mxu0 0
    %91 = vmatpush1.bf16.msra.mxu0 0
    %92 = vmatprep.subr.bf16.mxu0 0
    %93 = vmatpush1.bf16.msra.mxu0 0
    %94 = vmatprep.subr.bf16.mxu0 0
    %95 = vmatpush1.bf16.msra.mxu0 0
    %96 = vmatprep.subr.bf16.mxu0 0
    %97 = vmatpush1.bf16.msra.mxu0 0
    %98 = vmatprep.subr.bf16.mxu0 0
    %99 = vmatpush1.bf16.msra.mxu0 0
    %100 = vmatprep.subr.bf16.mxu0 0
    %101 = vmatpush1.bf16.msra.mxu0 0
    %102 = vmatprep.mubr.bf16.mxu0 0
    %103 = vmatmul.mubr.bf16.gmra.mrb[0].mxu0 %v64
    %v104 = vpop.f32.mrb[0].mxu0
    %v105 = vadd.f32 0.0, %v104
    %v106 = vpop.f32.mrb[0].mxu0
    %v107 = vpop.f32.mrb[0].mxu0
    %v108 = vpop.f32.mrb[0].mxu0
    %109 = vdwg.mxu0
    %v112 = vunpack.c.l.b16 %v59
    %v113 = vunpack.c.l.b16 %v60
    %v114 = vpack.c.b16 %v113, %v112
    %vm116 = vcmask 130048
    %v118 = vsel %vm116, %v58, 0
    %120 = vmatprep.subr.bf16.mxu0 0
    %121 = vmatpush1.bf16.msra.mxu0 %v114
    %122 = vmatprep.subr.bf16.mxu0 0
    %123 = vmatpush1.bf16.msra.mxu0 0
    %124 = vmatprep.subr.bf16.mxu0 0
    %125 = vmatpush1.bf16.msra.mxu0 0
    %126 = vmatprep.subr.bf16.mxu0 0
    %127 = vmatpush1.bf16.msra.mxu0 0
    %128 = vmatprep.subr.bf16.mxu0 0
    %129 = vmatpush1.bf16.msra.mxu0 0
    %130 = vmatprep.subr.bf16.mxu0 0
    %131 = vmatpush1.bf16.msra.mxu0 0
    %132 = vmatprep.subr.bf16.mxu0 0
    %133 = vmatpush1.bf16.msra.mxu0 0
    %134 = vmatprep.subr.bf16.mxu0 0
    %135 = vmatpush1.bf16.msra.mxu0 0
    %136 = vmatprep.subr.bf16.mxu0 0
    %137 = vmatpush1.bf16.msra.mxu0 0
    %138 = vmatprep.subr.bf16.mxu0 0
    %139 = vmatpush1.bf16.msra.mxu0 0
    %140 = vmatprep.subr.bf16.mxu0 0
    %141 = vmatpush1.bf16.msra.mxu0 0
    %142 = vmatprep.subr.bf16.mxu0 0
    %143 = vmatpush1.bf16.msra.mxu0 0
    %144 = vmatprep.subr.bf16.mxu0 0
    %145 = vmatpush1.bf16.msra.mxu0 0
    %146 = vmatprep.subr.bf16.mxu0 0
    %147 = vmatpush1.bf16.msra.mxu0 0
    %148 = vmatprep.subr.bf16.mxu0 0
    %149 = vmatpush1.bf16.msra.mxu0 0
    %150 = vmatprep.subr.bf16.mxu0 0
    %151 = vmatpush1.bf16.msra.mxu0 0
    %152 = vmatprep.mubr.bf16.mxu0 0
    %153 = vmatmul.mubr.bf16.gmra.mrb[0].mxu0 %v118
    %v154 = vpop.f32.mrb[0].mxu0
    %v155 = vadd.f32 %v105, %v154
    %v156 = vpop.f32.mrb[0].mxu0
    %v157 = vpop.f32.mrb[0].mxu0
    %v158 = vpop.f32.mrb[0].mxu0
    %159 = vdwg.mxu0
    %v160 = vmax.f32 %v155, 0.0
    %v161 = vpack.c.bf16 %v160, %v160
    %v162 = vld [vmem:[#allocation2] sm:$0xf]
    %v163 = vld [vmem:[#allocation2 + $0x4] sm:$0xf]
    %v164 = vld [vmem:[#allocation2 + $0x8] sm:$0xf]
    %v165 = vld [vmem:[#allocation2 + $0xc] sm:$0xf]
    %v166 = vld [vmem:[#allocation2 + $0x10] sm:$0xf]
    %v167 = vld [vmem:[#allocation2 + $0x14] sm:$0xf]
    %v168 = vld [vmem:[#allocation2 + $0x18] sm:$0xf]
    %v169 = vld [vmem:[#allocation2 + $0x1c] sm:$0xf]
    %v170 = vld [vmem:[%s6] sm:$0x1]
    %v172 = vlaneseq
    %v173 = vshrl.u32 %v172, 7
    %v174 = vsub.s32 0, %v173
    %v175 = vrot.slane %v170, %v174
    %v185 = vunpack.c.l.b16 %v162
    %v186 = vunpack.c.l.b16 %v163
    %v187 = vunpack.c.l.b16 %v164
    %v188 = vunpack.c.l.b16 %v165
    %v189 = vunpack.c.l.b16 %v166
    %v190 = vunpack.c.l.b16 %v167
    %v191 = vunpack.c.l.b16 %v168
    %v192 = vunpack.c.l.b16 %v169
    %v193 = vpack.c.b16 %v186, %v185
    %v194 = vpack.c.b16 %v188, %v187
    %v195 = vpack.c.b16 %v190, %v189
    %v196 = vpack.c.b16 %v192, %v191
    %vm201 = vcmask 523264
    %v203 = vsel %vm201, %v161, 0
    %205 = vmatprep.subr.bf16.mxu0 0
    %206 = vmatpush1.bf16.msra.mxu0 %v193
    %207 = vmatprep.subr.bf16.mxu0 0
    %208 = vmatpush1.bf16.msra.mxu0 %v194
    %209 = vmatprep.subr.bf16.mxu0 0
    %210 = vmatpush1.bf16.msra.mxu0 %v195
    %211 = vmatprep.subr.bf16.mxu0 0
    %212 = vmatpush1.bf16.msra.mxu0 %v196
    %213 = vmatprep.subr.bf16.mxu0 0
    %214 = vmatpush1.bf16.msra.mxu0 0
    %215 = vmatprep.subr.bf16.mxu0 0
    %216 = vmatpush1.bf16.msra.mxu0 0
    %217 = vmatprep.subr.bf16.mxu0 0
    %218 = vmatpush1.bf16.msra.mxu0 0
    %219 = vmatprep.subr.bf16.mxu0 0
    %220 = vmatpush1.bf16.msra.mxu0 0
    %221 = vmatprep.subr.bf16.mxu0 0
    %222 = vmatpush1.bf16.msra.mxu0 0
    %223 = vmatprep.subr.bf16.mxu0 0
    %224 = vmatpush1.bf16.msra.mxu0 0
    %225 = vmatprep.subr.bf16.mxu0 0
    %226 = vmatpush1.bf16.msra.mxu0 0
    %227 = vmatprep.subr.bf16.mxu0 0
    %228 = vmatpush1.bf16.msra.mxu0 0
    %229 = vmatprep.subr.bf16.mxu0 0
    %230 = vmatpush1.bf16.msra.mxu0 0
    %231 = vmatprep.subr.bf16.mxu0 0
    %232 = vmatpush1.bf16.msra.mxu0 0
    %233 = vmatprep.subr.bf16.mxu0 0
    %234 = vmatpush1.bf16.msra.mxu0 0
    %235 = vmatprep.subr.bf16.mxu0 0
    %236 = vmatpush1.bf16.msra.mxu0 0
    %237 = vmatprep.mubr.bf16.mxu0 0
    %238 = vmatmul.mubr.bf16.gmra.mrb[0].mxu0 %v203
    %v239 = vpop.f32.mrb[0].mxu0
    %v240 = vadd.f32 %v175, %v239
    %v241 = vpop.f32.mrb[0].mxu0
    %v242 = vpop.f32.mrb[0].mxu0
    %v243 = vpop.f32.mrb[0].mxu0
    %244 = vdwg.mxu0
    %v245 = vmax.f32 %v240, 0.0
    %v246 = vpack.c.bf16 %v245, %v245
    %v247 = vld [vmem:[%s7] sm:$0xf]
    %v248 = vld [vmem:[%s7 + $0x4] sm:$0xf]
    %v249 = vld [vmem:[%s7 + $0x8] sm:$0xf]
    %v250 = vld [vmem:[%s7 + $0xc] sm:$0xf]
    %v251 = vld [vmem:[%s7 + $0x10] sm:$0xf]
    %v252 = vld [vmem:[%s7 + $0x14] sm:$0xf]
    %v253 = vld [vmem:[%s7 + $0x18] sm:$0xf]
    %v254 = vld [vmem:[%s7 + $0x1c] sm:$0xf]
    %v255 = vld [vmem:[%s8] sm:$0x1]
    %v257 = vlaneseq
    %v258 = vshrl.u32 %v257, 7
    %v259 = vsub.s32 0, %v258
    %v260 = vrot.slane %v255, %v259
    %v270 = vunpack.c.l.b16 %v247
    %v271 = vunpack.c.l.b16 %v248
    %v272 = vunpack.c.l.b16 %v249
    %v273 = vunpack.c.l.b16 %v250
    %v274 = vunpack.c.l.b16 %v251
    %v275 = vunpack.c.l.b16 %v252
    %v276 = vunpack.c.l.b16 %v253
    %v277 = vunpack.c.l.b16 %v254
    %v278 = vpack.c.b16 %v271, %v270
    %v279 = vpack.c.b16 %v273, %v272
    %v280 = vpack.c.b16 %v275, %v274
    %v281 = vpack.c.b16 %v277, %v276
    %v287 = vsel %vm201, %v246, 0
    %289 = vmatprep.subr.bf16.mxu0 0
    %290 = vmatpush1.bf16.msra.mxu0 %v278
    %291 = vmatprep.subr.bf16.mxu0 0
    %292 = vmatpush1.bf16.msra.mxu0 %v279
    %293 = vmatprep.subr.bf16.mxu0 0
    %294 = vmatpush1.bf16.msra.mxu0 %v280
    %295 = vmatprep.subr.bf16.mxu0 0
    %296 = vmatpush1.bf16.msra.mxu0 %v281
    %297 = vmatprep.subr.bf16.mxu0 0
    %298 = vmatpush1.bf16.msra.mxu0 0
    %299 = vmatprep.subr.bf16.mxu0 0
    %300 = vmatpush1.bf16.msra.mxu0 0
    %301 = vmatprep.subr.bf16.mxu0 0
    %302 = vmatpush1.bf16.msra.mxu0 0
    %303 = vmatprep.subr.bf16.mxu0 0
    %304 = vmatpush1.bf16.msra.mxu0 0
    %305 = vmatprep.subr.bf16.mxu0 0
    %306 = vmatpush1.bf16.msra.mxu0 0
    %307 = vmatprep.subr.bf16.mxu0 0
    %308 = vmatpush1.bf16.msra.mxu0 0
    %309 = vmatprep.subr.bf16.mxu0 0
    %310 = vmatpush1.bf16.msra.mxu0 0
    %311 = vmatprep.subr.bf16.mxu0 0
    %312 = vmatpush1.bf16.msra.mxu0 0
    %313 = vmatprep.subr.bf16.mxu0 0
    %314 = vmatpush1.bf16.msra.mxu0 0
    %315 = vmatprep.subr.bf16.mxu0 0
    %316 = vmatpush1.bf16.msra.mxu0 0
    %317 = vmatprep.subr.bf16.mxu0 0
    %318 = vmatpush1.bf16.msra.mxu0 0
    %319 = vmatprep.subr.bf16.mxu0 0
    %320 = vmatpush1.bf16.msra.mxu0 0
    %321 = vmatprep.mubr.bf16.mxu0 0
    %322 = vmatmul.mubr.bf16.gmra.mrb[0].mxu0 %v287
    %v323 = vpop.f32.mrb[0].mxu0
    %v324 = vadd.f32 %v260, %v323
    %v325 = vpop.f32.mrb[0].mxu0
    %v326 = vpop.f32.mrb[0].mxu0
    %v327 = vpop.f32.mrb[0].mxu0
    %328 = vdwg.mxu0
    %v329 = vld [vmem:[%s0] sm:$0x1]
    %v330 = vfloor.f32 %v329
    %vm331 = vcmp.eq.f32.partialorder %v330, %v329
    %v332 = vsel %vm331, 1, 0
    %v333 = vcvt.s32.f32 %v332
    %vm334 = vcmp.ge.s32.totalorder %v50, 45
    %336 = vset.pattern.permute.xlu0 15
    %337 = vperm.xlu0 %336, %v333
    %v338 = vpop.permute.xlu0 %337
    %v340 = vsel %vm334, %v338, 1.0
    %v341 = vlaneseq
    %v342 = vshrl.u32 %v341, 7
    %v343 = vsub.s32 0, %v342
    %v344 = vrot.slane %v340, %v343
    %v345 = vmul.f32 %v324, %v344
    %vm346 = vcmask 392192
    %347 = vst.msk [vmem:[%s9] sm:$0xff] %vm346, %v345
    // Predicated region
    $region42: #{ff_model_forward.1} parent=1 // pred_check
      _
    $region43: #{ff_model_forward.1} parent=1 // pred_check_branch
      %349 = sbr.rel (0) target = $region45
    $region44: #{ff_model_forward.1} parent=1 // pred_region
      _
    $region45: #{ff_model_forward.1} parent=1 // pred_fallthru
      _
    // Predicated region
    $region46: #{ff_model_forward.1} parent=1 // pred_check
      _
    $region47: #{ff_model_forward.1} parent=1 // pred_check_branch
      %351 = sbr.rel (0) target = $region49
    $region48: #{ff_model_forward.1} parent=1 // pred_region
      _
    $region49: #{ff_model_forward.1} parent=1 // pred_fallthru
      _
    %352 = vsyncpa [#allocation3], 1

</llo_original>
